<compile_context>
chip_gen: v5e
topology: v5e:2x2
jax: 0.10.0
libtpu: 0.0.40
codegen_flags: <defaults>
</compile_context>

<pallas_src>
import functools

import jax
import jax.numpy as jnp
from jax.experimental import pallas as pl
from jax.experimental.pallas import tpu as pltpu


def _round_up(x, m):
    return (x + m - 1) // m * m


def _largest_divisor_multiple_of(n, base, lo, hi):
    """Largest multiple of `base` in [lo, hi] that divides `n`, or None."""
    c = (hi // base) * base
    while c >= lo:
        if n % c == 0:
            return c
        c -= base
    return None


def patch_embed_kernel(x_ref, w_ref, b_ref, o_ref):
    # x_ref: (tm, K) bf16, w_ref: (K, tn) bf16 (MXU-natural stationary layout),
    # b_ref: (1, tn) f32, o_ref: (tm, tn) bf16.
    # f32 MXU accumulation + f32 bias add, single bf16 rounding on the store.
    acc = jnp.dot(x_ref[...], w_ref[...], preferred_element_type=jnp.float32)
    o_ref[...] = (acc + b_ref[...]).astype(o_ref.dtype)


@functools.partial(jax.jit, static_argnames=("patch_size",))
def patch_embedding(x, weight, bias, *, patch_size):
    """x: (B, C, H, W); weight: (E, C, P, P); bias: (E,) -> (B, num_patches, E).

    Same semantics as PyTorch Conv2d(stride=P) + Flatten(2,3) + permute(0,2,1),
    computed in bf16 with f32 accumulation; the result dtype is bf16.
    """
    B, C, H, W = x.shape
    E = weight.shape[0]
    P = patch_size
    Hp, Wp = H // P, W // P
    M = B * Hp * Wp
    K = C * P * P

    compute_dtype = jnp.bfloat16
    out_dtype = jnp.bfloat16           # perf review: bf16 writeback

    # --- patch extraction (layout glue, no FLOPs) ---------------------------
    # Cast first so any materialized copy moves half the bytes; the
    # allow_input_fusion flag below lets XLA fuse this producer chain into the
    # pallas_call's x operand instead of round-tripping it through HBM.
    xb = x.astype(compute_dtype)
    x_patches = xb.reshape(B, C, Hp, P, Wp, P)
    x_patches = jnp.transpose(x_patches, (0, 2, 4, 1, 3, 5)).reshape(M, K)

    # Conv weight (E, C, P, P) -> (K, E): one-time small transposed copy so the
    # kernel's dot is a plain (M,K)x(K,N) contraction (no in-kernel transpose).
    w2d = weight.reshape(E, K).T.astype(compute_dtype)        # (K, E)
    b_row = bias.astype(jnp.float32).reshape(1, E)

    # --- E (lane) tiling -----------------------------------------------------
    E_pad = _round_up(E, 128)
    if E_pad * K * 2 <= 8 * 1024 * 1024:
        tn = E_pad                                   # whole weight resident
    else:
        # Largest multiple-of-128 divisor of E_pad (no extra E padding).
        tn = _largest_divisor_multiple_of(E_pad, 128, 128, 2048) or 128

    # --- M (sublane) tiling --------------------------------------------------
    out_itemsize = jnp.dtype(out_dtype).itemsize

    def vmem_estimate(tm):
        x_tile = tm * K * 2
        o_tile = tm * tn * out_itemsize
        w_tile = K * tn * 2
        b_tile = tn * 4
        return 2 * (x_tile + o_tile + w_tile + b_tile)   # double-buffered

    # Budget tiles against v7x's 32 MiB scoped-VMEM default (64 MiB physical),
    # leaving headroom; v5e/v6e have more so this is the binding case.
    tm_cap = 2048
    while tm_cap > 256 and vmem_estimate(tm_cap) > 24 * 1024 * 1024:
        tm_cap //= 2

    tm = None
    M_pad = M
    if M % 8 == 0:
        if M <= tm_cap:
            # Small M: prefer two grid steps so both v7x TensorCores get work.
            half = (_largest_divisor_multiple_of(M, 8, 8, M // 2)
                    if M >= 16 else None)
            tm = half if (half is not None and half >= 128) else M
        else:
            # Largest multiple-of-8 divisor of M in [256, tm_cap]: no padding,
            # no out-slice copy, <10% per-step overhead at these tile sizes.
            tm = _largest_divisor_multiple_of(M, 8, 256, tm_cap)
    if tm is None:
        # Fallback: pad M up to a multiple of a moderate tile.
        M8 = _round_up(M, 8)
        tm = min(512, M8, tm_cap) if tm_cap >= 8 else 8
        M_pad = _round_up(M8, tm)

    if E_pad != E:
        w2d = jnp.pad(w2d, ((0, 0), (0, E_pad - E)))
        b_row = jnp.pad(b_row, ((0, 0), (0, E_pad - E)))
    if M_pad != M:
        x_patches = jnp.pad(x_patches, ((0, M_pad - M), (0, 0)))

    grid_m = M_pad // tm
    grid_n = E_pad // tn

    cost = pl.CostEstimate(
        flops=2 * M * K * E,
        transcendentals=0,
        bytes_accessed=(M_pad * K * 2 + E_pad * K * 2 + E_pad * 4
                        + M_pad * E_pad * out_itemsize),
    )

    if grid_n == 1:
        # Whole weight is one tile: drop the degenerate E grid axis.
        grid = (grid_m,)
        in_specs = [
            pl.BlockSpec((tm, K), lambda i: (i, 0)),
            pl.BlockSpec((K, tn), lambda i: (0, 0)),   # resident across M
            pl.BlockSpec((1, tn), lambda i: (0, 0)),
        ]
        out_specs = pl.BlockSpec((tm, tn), lambda i: (i, 0))
        dims = ("parallel",)
    else:
        grid = (grid_m, grid_n)
        in_specs = [
            pl.BlockSpec((tm, K), lambda i, j: (i, 0)),
            pl.BlockSpec((K, tn), lambda i, j: (0, j)),
            pl.BlockSpec((1, tn), lambda i, j: (0, j)),
        ]
        out_specs = pl.BlockSpec((tm, tn), lambda i, j: (i, j))
        dims = ("parallel", "parallel")

    out = pl.pallas_call(
        patch_embed_kernel,
        out_shape=jax.ShapeDtypeStruct((M_pad, E_pad), out_dtype),
        grid=grid,
        in_specs=in_specs,
        out_specs=out_specs,
        cost_estimate=cost,
        compiler_params=pltpu.CompilerParams(
            # Independent output tiles: shard grid across TensorCores on v7x.
            dimension_semantics=dims,
            # Allow XLA to fuse the cast/reshape/transpose patch extraction
            # into the kernel's x operand (avoids an extra HBM activation copy).
            allow_input_fusion=(True, False, False),
        ),
    )(x_patches, w2d, b_row)

    if M_pad != M or E_pad != E:
        out = out[:M, :E]
    # (M, E) -> (B, num_patches, E)  == flatten(2,3).permute(0,2,1).
    return out.reshape(B, Hp * Wp, E)


def reference_conv_patch_embed(x, weight, bias, patch_size):
    """Pure-JAX reference using a real strided convolution (NCHW / OIHW)."""
    y = jax.lax.conv_general_dilated(
        x, weight,
        window_strides=(patch_size, patch_size),
        padding="VALID",
        dimension_numbers=("NCHW", "OIHW", "NCHW"),
    ) + bias.reshape(1, -1, 1, 1)
    B, E, Hp, Wp = y.shape
    return jnp.transpose(y.reshape(B, E, Hp * Wp), (0, 2, 1))


if __name__ == "__main__":
    # Small, deterministic configuration consistent with the module.
    B, C, H, W = 2, 4, 16, 16
    patch_size = 8
    embedding_dim = 32

    key = jax.random.PRNGKey(0)
    kx, kw, kb = jax.random.split(key, 3)

    x = jax.random.normal(kx, (B, C, H, W), dtype=jnp.float32)
    weight = jax.random.normal(
        kw, (embedding_dim, C, patch_size, patch_size), dtype=jnp.float32
    ) * 0.02
    bias = jax.random.normal(kb, (embedding_dim,), dtype=jnp.float32) * 0.02

    out = patch_embedding(x, weight, bias, patch_size=patch_size)
    out = jax.block_until_ready(out)

    num_patches = (H // patch_size) * (W // patch_size)
    assert out.shape == (B, num_patches, embedding_dim)
    assert out.dtype == jnp.bfloat16

    out_f32 = out.astype(jnp.float32)

    # Tight check: reference on bf16-quantized inputs (kernel computes bf16 x
    # bf16 with f32 accumulation); tolerance covers the single bf16 rounding
    # of the kernel's output.
    x_q = x.astype(jnp.bfloat16).astype(jnp.float32)
    w_q = weight.astype(jnp.bfloat16).astype(jnp.float32)
    ref_q = reference_conv_patch_embed(x_q, w_q, bias, patch_size)
    assert jnp.allclose(out_f32, ref_q, atol=1e-2, rtol=1e-2), float(
        jnp.max(jnp.abs(out_f32 - ref_q)))

    # Loose check against the full-f32 reference (bf16 rounding error bound).
    ref_f32 = reference_conv_patch_embed(x, weight, bias, patch_size)
    assert jnp.allclose(out_f32, ref_f32, atol=5e-2, rtol=5e-2)

    print("KERNEL_OK")
</pallas_src>

<mosaic_0001>
module attributes {stable_mosaic.version = 11 : i64} {
  func.func @patch_embed_kernel(%arg0: i32, %arg1: memref<8x256xbf16, #tpu.memory_space<vmem>>, %arg2: memref<256x128xbf16, #tpu.memory_space<vmem>>, %arg3: memref<1x128xf32, #tpu.memory_space<vmem>>, %arg4: memref<8x128xbf16, #tpu.memory_space<vmem>>) attributes {dimension_semantics = [#tpu.dimension_semantics<parallel>], iteration_bounds = array<i64: 1>, scalar_prefetch = 0 : i64, scratch_operands = 0 : i64, tpu.core_type = #tpu.core_type<tc>, window_params = [{transform_indices = @transform_0, window_bounds = array<i64: 8, 256>}, {pipeline_mode = #tpu.pipeline_mode<synchronous>, transform_indices = @transform_1, window_bounds = array<i64: 256, 128>}, {pipeline_mode = #tpu.pipeline_mode<synchronous>, transform_indices = @transform_2, window_bounds = array<i64: 1, 128>}, {transform_indices = @transform_3, window_bounds = array<i64: 8, 128>}]} {
    %c0 = arith.constant 0 : index
    %c0_0 = arith.constant 0 : index
    %0 = vector.load %arg1[%c0, %c0_0] : memref<8x256xbf16, #tpu.memory_space<vmem>>, vector<8x256xbf16>
    %c0_1 = arith.constant 0 : index
    %c0_2 = arith.constant 0 : index
    %1 = vector.load %arg2[%c0_1, %c0_2] : memref<256x128xbf16, #tpu.memory_space<vmem>>, vector<256x128xbf16>
    %cst = arith.constant dense<0.000000e+00> : vector<8x128xf32>
    %2 = tpu.matmul %0, %1, %cst {dimension_numbers = #tpu.dot_dimension_numbers<[1], [0], [0], [1], [0, 0, 1, 1], [], []>} : vector<8x256xbf16>, vector<256x128xbf16>, vector<8x128xf32> -> vector<8x128xf32>
    %c0_3 = arith.constant 0 : index
    %c0_4 = arith.constant 0 : index
    %3 = vector.load %arg3[%c0_3, %c0_4] : memref<1x128xf32, #tpu.memory_space<vmem>>, vector<1x128xf32>
    %4 = vector.broadcast %3 : vector<1x128xf32> to vector<8x128xf32>
    %5 = arith.addf %2, %4 : vector<8x128xf32>
    %6 = arith.truncf %5 : vector<8x128xf32> to vector<8x128xbf16>
    %c0_5 = arith.constant 0 : index
    %c0_6 = arith.constant 0 : index
    %7 = vector.load %arg4[%c0_5, %c0_6] : memref<8x128xbf16, #tpu.memory_space<vmem>>, vector<8x128xbf16>
    tpu.vector_store %arg4[%c0_5, %c0_6], %6 {strides = array<i32>} : memref<8x128xbf16, #tpu.memory_space<vmem>>, vector<8x128xbf16>,
    return
  }
  func.func @transform_0(%arg0: i32) -> (i32, i32) {
    %c0_i32 = arith.constant 0 : i32
    %c0_i32_0 = arith.constant 0 : i32
    return %arg0, %c0_i32 : i32, i32
  }
  func.func @transform_1(%arg0: i32) -> (i32, i32) {
    %c0_i32 = arith.constant 0 : i32
    %c0_i32_0 = arith.constant 0 : i32
    %c0_i32_1 = arith.constant 0 : i32
    return %c0_i32, %c0_i32_0 : i32, i32
  }
  func.func @transform_2(%arg0: i32) -> (i32, i32) {
    %c0_i32 = arith.constant 0 : i32
    %c0_i32_0 = arith.constant 0 : i32
    %c0_i32_1 = arith.constant 0 : i32
    return %c0_i32, %c0_i32_0 : i32, i32
  }
  func.func @transform_3(%arg0: i32) -> (i32, i32) {
    %c0_i32 = arith.constant 0 : i32
    %c0_i32_0 = arith.constant 0 : i32
    return %arg0, %c0_i32 : i32, i32
  }
}

</mosaic_0001>

<llo_original>
// kernel: patch_embedding.1
$region0: #{patch_embedding.1}
  #allocation0 [shape = 'u32[]', space=smem, size = 0x4, offset = 0x4, fixed_abs, tag = 'smem constant byte address 0x4 - core index']
  #allocation1 [shape = 'u32[72,128]{1,0:T(1,128)}', space=vmem, size = 0x9000, scoped, tag = 'internal scratch']
  %s0 = inlined_call_operand.vmem [shape: bf16[8,256], index: 0, kind: input, shape index: {}]
  %s1 = inlined_call_operand.vmem [shape: bf16[256,128], index: 1, kind: input, shape index: {}]
  %s2 = inlined_call_operand.vmem [shape: f32[1,128], index: 2, kind: input, shape index: {}]
  %s3 = inlined_call_operand.hbm [shape: bf16[8,128], index: 3, kind: output, shape index: {}]
  %s4 = sld [smem:[#allocation0]]
  $region22: #{patch_embedding.1} parent=0
    _
  %s6 = ssub.s32 1, %s4
  %s7 = scalar_select 0, %s6, %s4
  $region1: #{patch_embedding.1} parent=0
    #allocation2 [shape = 'u8[2048]{0}', space=vmem, size = 0x800, scoped, tag = 'output window, operand 0, single buffered']
    #allocation3 [shape = 's32[1]{0}', space=sflag, size = 0x4, scoped, tag = 'scoped memory for patch_embedding.1']
    %8 = vsyncpa [#allocation3], 0
    // Predicated region
    $region2: #{patch_embedding.1} parent=1 // pred_check
      _
    $region3: #{patch_embedding.1} parent=1 // pred_check_branch
      %10 = sbr.rel (0) target = $region5
    $region4: #{patch_embedding.1} parent=1 // pred_region
      _
    $region5: #{patch_embedding.1} parent=1 // pred_fallthru
      _
    // Predicated region
    $region6: #{patch_embedding.1} parent=1 // pred_check
      _
    $region7: #{patch_embedding.1} parent=1 // pred_check_branch
      %12 = sbr.rel (0) target = $region9
    $region8: #{patch_embedding.1} parent=1 // pred_region
      _
    $region9: #{patch_embedding.1} parent=1 // pred_fallthru
      _
    // Predicated region
    $region10: #{patch_embedding.1} parent=1 // pred_check
      _
    $region11: #{patch_embedding.1} parent=1 // pred_check_branch
      %14 = sbr.rel (0) target = $region13
    $region12: #{patch_embedding.1} parent=1 // pred_region
      _
    $region13: #{patch_embedding.1} parent=1 // pred_fallthru
      _
    %v15 = vld [vmem:[%s0] sm:$0xff]
    %v16 = vld [vmem:[%s1] sm:$0xf]
    %v17 = vld [vmem:[%s1 + $0x4] sm:$0xf]
    %v18 = vld [vmem:[%s1 + $0x8] sm:$0xf]
    %v19 = vld [vmem:[%s1 + $0xc] sm:$0xf]
    %v20 = vld [vmem:[%s1 + $0x10] sm:$0xf]
    %v21 = vld [vmem:[%s1 + $0x14] sm:$0xf]
    %v22 = vld [vmem:[%s1 + $0x18] sm:$0xf]
    %v23 = vld [vmem:[%s1 + $0x1c] sm:$0xf]
    %v24 = vld [vmem:[%s1 + $0x20] sm:$0xf]
    %v25 = vld [vmem:[%s1 + $0x24] sm:$0xf]
    %v26 = vld [vmem:[%s1 + $0x28] sm:$0xf]
    %v27 = vld [vmem:[%s1 + $0x2c] sm:$0xf]
    %v28 = vld [vmem:[%s1 + $0x30] sm:$0xf]
    %v29 = vld [vmem:[%s1 + $0x34] sm:$0xf]
    %v30 = vld [vmem:[%s1 + $0x38] sm:$0xf]
    %v31 = vld [vmem:[%s1 + $0x3c] sm:$0xf]
    %v32 = vld [vmem:[%s1 + $0x40] sm:$0xf]
    %v33 = vld [vmem:[%s1 + $0x44] sm:$0xf]
    %v34 = vld [vmem:[%s1 + $0x48] sm:$0xf]
    %v35 = vld [vmem:[%s1 + $0x4c] sm:$0xf]
    %v36 = vld [vmem:[%s1 + $0x50] sm:$0xf]
    %v37 = vld [vmem:[%s1 + $0x54] sm:$0xf]
    %v38 = vld [vmem:[%s1 + $0x58] sm:$0xf]
    %v39 = vld [vmem:[%s1 + $0x5c] sm:$0xf]
    %v40 = vld [vmem:[%s1 + $0x60] sm:$0xf]
    %v41 = vld [vmem:[%s1 + $0x64] sm:$0xf]
    %v42 = vld [vmem:[%s1 + $0x68] sm:$0xf]
    %v43 = vld [vmem:[%s1 + $0x6c] sm:$0xf]
    %v44 = vld [vmem:[%s1 + $0x70] sm:$0xf]
    %v45 = vld [vmem:[%s1 + $0x74] sm:$0xf]
    %v46 = vld [vmem:[%s1 + $0x78] sm:$0xf]
    %v47 = vld [vmem:[%s1 + $0x7c] sm:$0xf]
    %v48 = vld [vmem:[%s2] sm:$0x1]
    %v50 = vperm.slane %v48, 0
    %v53 = vunpack.c.l.b16 %v15
    %v54 = vunpack.c.h.b16 %v15
    %v55 = vpack.c.b16 %v53, %v53
    %v56 = vpack.c.b16 %v54, %v54
    %v91 = vunpack.c.l.b16 %v16
    %v92 = vunpack.c.l.b16 %v17
    %v93 = vunpack.c.l.b16 %v18
    %v94 = vunpack.c.l.b16 %v19
    %v95 = vunpack.c.l.b16 %v20
    %v96 = vunpack.c.l.b16 %v21
    %v97 = vunpack.c.l.b16 %v22
    %v98 = vunpack.c.l.b16 %v23
    %v99 = vunpack.c.l.b16 %v24
    %v100 = vunpack.c.l.b16 %v25
    %v101 = vunpack.c.l.b16 %v26
    %v102 = vunpack.c.l.b16 %v27
    %v103 = vunpack.c.l.b16 %v28
    %v104 = vunpack.c.l.b16 %v29
    %v105 = vunpack.c.l.b16 %v30
    %v106 = vunpack.c.l.b16 %v31
    %v107 = vunpack.c.l.b16 %v32
    %v108 = vunpack.c.l.b16 %v33
    %v109 = vunpack.c.l.b16 %v34
    %v110 = vunpack.c.l.b16 %v35
    %v111 = vunpack.c.l.b16 %v36
    %v112 = vunpack.c.l.b16 %v37
    %v113 = vunpack.c.l.b16 %v38
    %v114 = vunpack.c.l.b16 %v39
    %v115 = vunpack.c.l.b16 %v40
    %v116 = vunpack.c.l.b16 %v41
    %v117 = vunpack.c.l.b16 %v42
    %v118 = vunpack.c.l.b16 %v43
    %v119 = vunpack.c.l.b16 %v44
    %v120 = vunpack.c.l.b16 %v45
    %v121 = vunpack.c.l.b16 %v46
    %v122 = vunpack.c.l.b16 %v47
    %v123 = vpack.c.b16 %v92, %v91
    %v124 = vpack.c.b16 %v94, %v93
    %v125 = vpack.c.b16 %v96, %v95
    %v126 = vpack.c.b16 %v98, %v97
    %v127 = vpack.c.b16 %v100, %v99
    %v128 = vpack.c.b16 %v102, %v101
    %v129 = vpack.c.b16 %v104, %v103
    %v130 = vpack.c.b16 %v106, %v105
    %v131 = vpack.c.b16 %v108, %v107
    %v132 = vpack.c.b16 %v110, %v109
    %v133 = vpack.c.b16 %v112, %v111
    %v134 = vpack.c.b16 %v114, %v113
    %v135 = vpack.c.b16 %v116, %v115
    %v136 = vpack.c.b16 %v118, %v117
    %v137 = vpack.c.b16 %v120, %v119
    %v138 = vpack.c.b16 %v122, %v121
    %155 = vmatpush.bf16.msra.mxu0 %v130
    %156 = vmatpush.bf16.msra.mxu0 %v129
    %157 = vmatpush.bf16.msra.mxu0 %v128
    %158 = vmatpush.bf16.msra.mxu0 %v127
    %159 = vmatpush.bf16.msra.mxu0 %v126
    %160 = vmatpush.bf16.msra.mxu0 %v125
    %161 = vmatpush.bf16.msra.mxu0 %v124
    %162 = vmatpush.bf16.msra.mxu0 %v123
    %163 = vmatmul.bf16.gmra.mxu0 %v55
    %v164 = vpop.f32.mrf.mxu0
    %v165 = vadd.f32 %v50, %v164
    %v166 = vpop.f32.mrf.mxu0
    %167 = vdwg.mxu0
    %168 = vmatpush.bf16.msra.mxu0 %v138
    %169 = vmatpush.bf16.msra.mxu0 %v137
    %170 = vmatpush.bf16.msra.mxu0 %v136
    %171 = vmatpush.bf16.msra.mxu0 %v135
    %172 = vmatpush.bf16.msra.mxu0 %v134
    %173 = vmatpush.bf16.msra.mxu0 %v133
    %174 = vmatpush.bf16.msra.mxu0 %v132
    %175 = vmatpush.bf16.msra.mxu0 %v131
    %176 = vmatmul.bf16.gmra.mxu0 %v56
    %v177 = vpop.f32.mrf.mxu0
    %v178 = vadd.f32 %v165, %v177
    %v179 = vpop.f32.mrf.mxu0
    %180 = vdwg.mxu0
    %v181 = vpack.c.bf16 %v178, %v178
    %182 = vst [vmem:[#allocation2] sm:$0xf] %v181
    // Predicated region
    $region14: #{patch_embedding.1} parent=1 // pred_check
      _
    $region15: #{patch_embedding.1} parent=1 // pred_check_branch
      %184 = sbr.rel (0) target = $region17
    $region16: #{patch_embedding.1} parent=1 // pred_region
      %186 = vsyncadd [#allocation3], 0
      %s188 = sshll.u32 [#allocation2], 4
      %s189 = int_to_ptr.vmem [resolvable:$true] %s188
      %s190 = sshll.u32 %s3, 4
      %s191 = int_to_ptr.hbm [resolvable:$true] %s190
      %193 = dma.vmem_to_hbm [thread:$0]  %s189, 64, %s191, [#allocation3]
    $region17: #{patch_embedding.1} parent=1 // pred_fallthru
      _
    // Predicated region
    $region18: #{patch_embedding.1} parent=1 // pred_check
      _
    $region19: #{patch_embedding.1} parent=1 // pred_check_branch
      %195 = sbr.rel (0) target = $region21
    $region20: #{patch_embedding.1} parent=1 // pred_region
      %197 = dma.done [#allocation3], 64
    $region21: #{patch_embedding.1} parent=1 // pred_fallthru
      _
    %198 = vsyncpa [#allocation3], 1

</llo_original>
